<compile_context>
chip_gen: v5e
topology: v5e:2x2
jax: 0.10.0
libtpu: 0.0.40
codegen_flags: <defaults>
</compile_context>

<pallas_src>
import functools

import jax
import jax.numpy as jnp
from jax.experimental import pallas as pl
from jax.experimental.pallas import tpu as pltpu


def _round_up(x: int, m: int) -> int:
    return (x + m - 1) // m * m


def _vmem_bytes(tr: int, K: int, Wp: int, W: int, Cin_p: int, TC: int) -> int:
    """Conservative per-step VMEM estimate (with lane/sublane padding)."""
    in_tile = (tr + K - 1) * _round_up(Wp, 16) * _round_up(Cin_p, 128) * 2      # bf16
    xk_tile = (tr + K - 1) * _round_up(W, 16) * _round_up(K * Cin_p, 128) * 2   # bf16
    out_tile = tr * _round_up(W, 8) * TC * 4                                    # f32
    w_tile = K * _round_up(K * Cin_p, 16) * TC * 2                              # bf16
    bias_tile = 8 * TC * 4
    acc = tr * _round_up(W, 8) * TC * 4                                         # f32 value
    # inputs/outputs are double-buffered by the pipeline; xk/acc are transient
    return 2 * (in_tile + out_tile + w_tile + bias_tile) + xk_tile + acc


def _pick_row_block(H: int, K: int, Wp: int, W: int, Cin_p: int, TC: int,
                    budget: int = 20 * 1024 * 1024) -> int:
    h8 = _round_up(max(H, 8), 8)
    for tr in (256, 128, 64, 32, 16, 8):
        if tr > h8:
            continue
        if _vmem_bytes(tr, K, Wp, W, Cin_p, TC) <= budget:
            return tr
    return 8


def _make_conv_kernel(K: int, tr: int, W: int, Cin_p: int):
    KC = K * Cin_p

    def conv_kernel(x_ref, w_ref, b_ref, o_ref):
        # x_ref: (tr + K - 1, Wp, Cin_p)   bf16  -- row tile + halo
        # w_ref: (K, K*Cin_p, TC)          bf16  -- lane-dense weight slab
        # b_ref: (1, TC)                   f32
        # o_ref: (tr, W, TC)               f32
        xt = x_ref[...]                                           # bf16 tile
        # Fuse the K kw-taps into the channel (lane) axis once per tile.
        xk = jnp.concatenate([xt[:, kw:kw + W, :] for kw in range(K)], axis=-1)
        # xk: (tr + K - 1, W, K*Cin_p)
        acc = None
        for kh in range(K):
            # Slicing along the outermost (row) axis only -> no relayout.
            patch = xk[kh:kh + tr].reshape(tr * W, KC)            # bf16
            contrib = jnp.dot(patch, w_ref[kh],
                              preferred_element_type=jnp.float32)
            acc = contrib if acc is None else acc + contrib
        out = jnp.maximum(acc + b_ref[...], 0.0)                  # bias + ReLU (f32)
        o_ref[...] = out.reshape(tr, W, o_ref.shape[-1]).astype(o_ref.dtype)

    return conv_kernel


@functools.partial(jax.jit, static_argnames=("kernel_size", "row_block"))
def conv_forward(x_nchw, weight, bias, kernel_size=3, row_block=None):
    """Conv(inp_dim, out_dim, kernel_size=3, stride=1, bn=False, relu=True).

    x_nchw : (B, Cin, H, W) float32 (PyTorch layout)
    weight : (Cout, Cin, K, K) float32 (PyTorch layout)
    bias   : (Cout,) float32
    returns: (B, Cout, H, W) float32
    """
    B, Cin, H, W = x_nchw.shape
    Cout = weight.shape[0]
    K = kernel_size
    assert K % 2 == 1, "padding=(K-1)//2 matches PyTorch 'same' only for odd K"
    pad = (K - 1) // 2
    Wp = W + 2 * pad

    # --- channel padding: lane-dense output, sublane-friendly input ---------
    Cin_p = _round_up(Cin, 8)
    Cout_p = _round_up(Cout, 128)
    TC = 256 if (Cout_p % 256 == 0) else 128          # cout block (mult. of 128)

    # --- row-block (spatial) tiling ------------------------------------------
    if row_block is None:
        tr = _pick_row_block(H, K, Wp, W, Cin_p, TC)
    else:
        tr = int(row_block)
    H_p = _round_up(H, tr)
    nblk = H_p // tr

    # --- layout plumbing in plain JAX ----------------------------------------
    x_nhwc = jnp.transpose(x_nchw, (0, 2, 3, 1)).astype(jnp.bfloat16)
    x_pad = jnp.pad(
        x_nhwc,
        ((0, 0), (pad, pad + (H_p - H)), (pad, pad), (0, Cin_p - Cin)),
    )                                                  # (B, H_p+2p, Wp, Cin_p)
    # Overlapped row blocks with (K-1)-row halo; duplication is only K-1 rows
    # per block so HBM overhead is (K-1)/tr.
    xb = jnp.stack(
        [x_pad[:, r * tr: r * tr + tr + K - 1] for r in range(nblk)], axis=1
    )                                                  # (B, nblk, tr+K-1, Wp, Cin_p)

    # Weight -> (K, K*Cin_p, Cout_p) lane-dense slab, channel order kw*Cin_p + c
    w_t = jnp.transpose(weight, (2, 3, 1, 0))          # (K, K, Cin, Cout)
    w_t = jnp.pad(w_t, ((0, 0), (0, 0), (0, Cin_p - Cin), (0, Cout_p - Cout)))
    w_slab = w_t.reshape(K, K * Cin_p, Cout_p).astype(jnp.bfloat16)

    b_pad = jnp.pad(bias, (0, Cout_p - Cout)).reshape(1, Cout_p).astype(jnp.float32)

    kernel = _make_conv_kernel(K, tr, W, Cin_p)
    n_co = Cout_p // TC

    out_full = pl.pallas_call(
        kernel,
        out_shape=jax.ShapeDtypeStruct((B, H_p, W, Cout_p), jnp.float32),
        grid=(B, nblk, n_co),
        in_specs=[
            # one row tile (+halo) of one batch element per step; index does
            # not depend on c, so it is NOT re-DMAed across cout blocks.
            pl.BlockSpec((None, None, tr + K - 1, Wp, Cin_p),
                         lambda b, r, c: (b, r, 0, 0, 0)),
            # weight slab, blocked over Cout
            pl.BlockSpec((K, K * Cin_p, TC), lambda b, r, c: (0, 0, c)),
            # bias, blocked over Cout
            pl.BlockSpec((1, TC), lambda b, r, c: (0, c)),
        ],
        out_specs=pl.BlockSpec((None, tr, W, TC), lambda b, r, c: (b, r, 0, c)),
        compiler_params=pltpu.CompilerParams(
            dimension_semantics=("parallel", "parallel", "parallel"),
            vmem_limit_bytes=32 * 1024 * 1024,
        ),
    )(xb, w_slab, b_pad)

    out = out_full[:, :H, :, :Cout]
    return jnp.transpose(out, (0, 3, 1, 2))


def _reference(x, weight, bias, K):
    """Same math as the kernel (bf16 operands, f32 accumulation)."""
    Cout = weight.shape[0]
    xq = x.astype(jnp.bfloat16).astype(jnp.float32)
    wq = weight.astype(jnp.bfloat16).astype(jnp.float32)
    pad = (K - 1) // 2
    ref = jax.lax.conv_general_dilated(
        xq, wq, window_strides=(1, 1), padding=((pad, pad), (pad, pad)),
        dimension_numbers=("NCHW", "OIHW", "NCHW"),
        precision=jax.lax.Precision.HIGHEST,
    ) + bias.reshape(1, Cout, 1, 1)
    return jnp.maximum(ref, 0.0)


if __name__ == "__main__":
    key = jax.random.PRNGKey(0)

    # --- test 1: small shapes, explicit row_block=8 -> 2 row blocks (halo path)
    B, Cin, H, W = 2, 4, 16, 16
    Cout, K = 8, 3
    kx, kw_, kb, key = jax.random.split(key, 4)
    x = jax.random.normal(kx, (B, Cin, H, W), dtype=jnp.float32)
    bound = 1.0 / (Cin * K * K) ** 0.5
    weight = jax.random.uniform(kw_, (Cout, Cin, K, K), jnp.float32, -bound, bound)
    bias = jax.random.uniform(kb, (Cout,), jnp.float32, -bound, bound)

    out = jax.block_until_ready(conv_forward(x, weight, bias, kernel_size=K, row_block=8))
    ref = _reference(x, weight, bias, K)
    assert out.shape == (B, Cout, H, W)
    err = float(jnp.max(jnp.abs(out - ref)))
    assert jnp.allclose(out, ref, atol=2e-3, rtol=2e-3), f"test1 mismatch, max err {err}"

    # --- test 2: wider channels, Cout padded to 384 -> 3 cout blocks (TC=128)
    B2, Cin2, H2, W2 = 2, 32, 16, 16
    Cout2 = 320
    kx, kw_, kb, key = jax.random.split(key, 4)
    x2 = jax.random.normal(kx, (B2, Cin2, H2, W2), dtype=jnp.float32)
    bound2 = 1.0 / (Cin2 * K * K) ** 0.5
    weight2 = jax.random.uniform(kw_, (Cout2, Cin2, K, K), jnp.float32, -bound2, bound2)
    bias2 = jax.random.uniform(kb, (Cout2,), jnp.float32, -bound2, bound2)

    out2 = jax.block_until_ready(conv_forward(x2, weight2, bias2, kernel_size=K))
    ref2 = _reference(x2, weight2, bias2, K)
    assert out2.shape == (B2, Cout2, H2, W2)
    err2 = float(jnp.max(jnp.abs(out2 - ref2)))
    assert jnp.allclose(out2, ref2, atol=2e-3, rtol=2e-3), f"test2 mismatch, max err {err2}"

    print("KERNEL_OK")
</pallas_src>

<mosaic_0001>
module attributes {stable_mosaic.version = 11 : i64} {
  func.func @conv_kernel(%arg0: i32, %arg1: i32, %arg2: i32, %arg3: memref<1x1x10x18x8xbf16, #tpu.memory_space<vmem>>, %arg4: memref<3x24x128xbf16, #tpu.memory_space<vmem>>, %arg5: memref<1x128xf32, #tpu.memory_space<vmem>>, %arg6: memref<1x8x16x128xf32, #tpu.memory_space<vmem>>) attributes {dimension_semantics = [#tpu.dimension_semantics<parallel>, #tpu.dimension_semantics<parallel>, #tpu.dimension_semantics<parallel>], iteration_bounds = array<i64: 2, 2, 1>, scalar_prefetch = 0 : i64, scratch_operands = 0 : i64, tpu.core_type = #tpu.core_type<tc>, window_params = [{transform_indices = @transform_0, window_bounds = array<i64: 1, 1, 10, 18, 8>}, {transform_indices = @transform_1, window_bounds = array<i64: 3, 24, 128>}, {transform_indices = @transform_2, window_bounds = array<i64: 1, 128>}, {transform_indices = @transform_3, window_bounds = array<i64: 1, 8, 16, 128>}]} {
    %c0 = arith.constant 0 : index
    %c0_0 = arith.constant 0 : index
    %c0_1 = arith.constant 0 : index
    %c0_2 = arith.constant 0 : index
    %c0_3 = arith.constant 0 : index
    %0 = vector.load %arg3[%c0, %c0_0, %c0_1, %c0_2, %c0_3] : memref<1x1x10x18x8xbf16, #tpu.memory_space<vmem>>, vector<1x1x10x18x8xbf16>
    %1 = vector.shape_cast %0 : vector<1x1x10x18x8xbf16> to vector<10x18x8xbf16>
    %2 = vector.extract_strided_slice %1 {offsets = [0, 0, 0], sizes = [10, 16, 8], strides = [1, 1, 1]} : vector<10x18x8xbf16> to vector<10x16x8xbf16>
    %3 = vector.extract_strided_slice %1 {offsets = [0, 1, 0], sizes = [10, 16, 8], strides = [1, 1, 1]} : vector<10x18x8xbf16> to vector<10x16x8xbf16>
    %4 = vector.extract_strided_slice %1 {offsets = [0, 2, 0], sizes = [10, 16, 8], strides = [1, 1, 1]} : vector<10x18x8xbf16> to vector<10x16x8xbf16>
    %5 = tpu.concatenate %2, %3, %4 in 2 : vector<10x16x8xbf16>, vector<10x16x8xbf16>, vector<10x16x8xbf16> -> vector<10x16x24xbf16>
    %6 = vector.extract_strided_slice %5 {offsets = [0, 0, 0], sizes = [8, 16, 24], strides = [1, 1, 1]} : vector<10x16x24xbf16> to vector<8x16x24xbf16>
    %7 = vector.shape_cast %6 : vector<8x16x24xbf16> to vector<128x24xbf16>
    %c0_4 = arith.constant 0 : index
    %c0_5 = arith.constant 0 : index
    %c0_6 = arith.constant 0 : index
    %8 = vector.load %arg4[%c0_4, %c0_5, %c0_6] : memref<3x24x128xbf16, #tpu.memory_space<vmem>>, vector<1x24x128xbf16>
    %9 = vector.shape_cast %8 : vector<1x24x128xbf16> to vector<24x128xbf16>
    %cst = arith.constant dense<0.000000e+00> : vector<128x128xf32>
    %10 = tpu.matmul %7, %9, %cst {dimension_numbers = #tpu.dot_dimension_numbers<[1], [0], [0], [1], [0, 0, 1, 1], [], []>} : vector<128x24xbf16>, vector<24x128xbf16>, vector<128x128xf32> -> vector<128x128xf32>
    %11 = vector.extract_strided_slice %5 {offsets = [1, 0, 0], sizes = [8, 16, 24], strides = [1, 1, 1]} : vector<10x16x24xbf16> to vector<8x16x24xbf16>
    %12 = vector.shape_cast %11 : vector<8x16x24xbf16> to vector<128x24xbf16>
    %c1 = arith.constant 1 : index
    %c0_7 = arith.constant 0 : index
    %c0_8 = arith.constant 0 : index
    %13 = vector.load %arg4[%c1, %c0_7, %c0_8] : memref<3x24x128xbf16, #tpu.memory_space<vmem>>, vector<1x24x128xbf16>
    %14 = vector.shape_cast %13 : vector<1x24x128xbf16> to vector<24x128xbf16>
    %cst_9 = arith.constant dense<0.000000e+00> : vector<128x128xf32>
    %15 = tpu.matmul %12, %14, %cst_9 {dimension_numbers = #tpu.dot_dimension_numbers<[1], [0], [0], [1], [0, 0, 1, 1], [], []>} : vector<128x24xbf16>, vector<24x128xbf16>, vector<128x128xf32> -> vector<128x128xf32>
    %16 = arith.addf %10, %15 : vector<128x128xf32>
    %17 = vector.extract_strided_slice %5 {offsets = [2, 0, 0], sizes = [8, 16, 24], strides = [1, 1, 1]} : vector<10x16x24xbf16> to vector<8x16x24xbf16>
    %18 = vector.shape_cast %17 : vector<8x16x24xbf16> to vector<128x24xbf16>
    %c2 = arith.constant 2 : index
    %c0_10 = arith.constant 0 : index
    %c0_11 = arith.constant 0 : index
    %19 = vector.load %arg4[%c2, %c0_10, %c0_11] : memref<3x24x128xbf16, #tpu.memory_space<vmem>>, vector<1x24x128xbf16>
    %20 = vector.shape_cast %19 : vector<1x24x128xbf16> to vector<24x128xbf16>
    %cst_12 = arith.constant dense<0.000000e+00> : vector<128x128xf32>
    %21 = tpu.matmul %18, %20, %cst_12 {dimension_numbers = #tpu.dot_dimension_numbers<[1], [0], [0], [1], [0, 0, 1, 1], [], []>} : vector<128x24xbf16>, vector<24x128xbf16>, vector<128x128xf32> -> vector<128x128xf32>
    %22 = arith.addf %16, %21 : vector<128x128xf32>
    %c0_13 = arith.constant 0 : index
    %c0_14 = arith.constant 0 : index
    %23 = vector.load %arg5[%c0_13, %c0_14] : memref<1x128xf32, #tpu.memory_space<vmem>>, vector<1x128xf32>
    %24 = vector.broadcast %23 : vector<1x128xf32> to vector<128x128xf32>
    %25 = arith.addf %22, %24 : vector<128x128xf32>
    %cst_15 = arith.constant 0.000000e+00 : f32
    %26 = vector.broadcast %cst_15 : f32 to vector<128x128xf32>
    %27 = arith.maximumf %25, %26 : vector<128x128xf32>
    %28 = vector.shape_cast %27 : vector<128x128xf32> to vector<8x16x128xf32>
    %c0_16 = arith.constant 0 : index
    %c0_17 = arith.constant 0 : index
    %c0_18 = arith.constant 0 : index
    %c0_19 = arith.constant 0 : index
    %29 = vector.load %arg6[%c0_16, %c0_17, %c0_18, %c0_19] : memref<1x8x16x128xf32, #tpu.memory_space<vmem>>, vector<1x8x16x128xf32>
    %30 = vector.shape_cast %29 : vector<1x8x16x128xf32> to vector<8x16x128xf32>
    %31 = vector.shape_cast %28 : vector<8x16x128xf32> to vector<1x8x16x128xf32>
    tpu.vector_store %arg6[%c0_16, %c0_17, %c0_18, %c0_19], %31 {strides = array<i32>} : memref<1x8x16x128xf32, #tpu.memory_space<vmem>>, vector<1x8x16x128xf32>,
    return
  }
  func.func @transform_0(%arg0: i32, %arg1: i32, %arg2: i32) -> (i32, i32, i32, i32, i32) {
    %c0_i32 = arith.constant 0 : i32
    %c0_i32_0 = arith.constant 0 : i32
    %c0_i32_1 = arith.constant 0 : i32
    %c0_i32_2 = arith.constant 0 : i32
    return %arg0, %arg1, %c0_i32, %c0_i32_0, %c0_i32_1 : i32, i32, i32, i32, i32
  }
  func.func @transform_1(%arg0: i32, %arg1: i32, %arg2: i32) -> (i32, i32, i32) {
    %c0_i32 = arith.constant 0 : i32
    %c0_i32_0 = arith.constant 0 : i32
    %c0_i32_1 = arith.constant 0 : i32
    return %c0_i32, %c0_i32_0, %arg2 : i32, i32, i32
  }
  func.func @transform_2(%arg0: i32, %arg1: i32, %arg2: i32) -> (i32, i32) {
    %c0_i32 = arith.constant 0 : i32
    %c0_i32_0 = arith.constant 0 : i32
    return %c0_i32, %arg2 : i32, i32
  }
  func.func @transform_3(%arg0: i32, %arg1: i32, %arg2: i32) -> (i32, i32, i32, i32) {
    %c0_i32 = arith.constant 0 : i32
    %c0_i32_0 = arith.constant 0 : i32
    return %arg0, %arg1, %c0_i32, %arg2 : i32, i32, i32, i32
  }
}

</mosaic_0001>

<llo_original>
// kernel: conv_forward.1
$region0: #{conv_forward.1}
  #allocation0 [shape = 'u32[]', space=smem, size = 0x4, offset = 0x4, fixed_abs, tag = 'smem constant byte address 0x4 - core index']
  #allocation1 [shape = 'u32[72,128]{1,0:T(1,128)}', space=vmem, size = 0x9000, scoped, tag = 'internal scratch']
  %s0 = inlined_call_operand.vmem [shape: bf16[2,2,10,18,8], index: 0, kind: input, shape index: {}]
  %s1 = inlined_call_operand.vmem [shape: bf16[3,24,128], index: 1, kind: input, shape index: {}]
  %s2 = inlined_call_operand.vmem [shape: f32[1,128], index: 2, kind: input, shape index: {}]
  %s3 = inlined_call_operand.vmem [shape: f32[2,16,16,128], index: 3, kind: output, shape index: {}]
  %s4 = sld [smem:[#allocation0]]
  $region45: #{conv_forward.1} parent=0
    _
  %s6 = ssub.s32 1, %s4
  %s7 = scalar_select 0, %s6, %s4
  loop: start=0, step=1, limit=6
  $region2: #{conv_forward.1} parent=0 // loop_pre_header
    _
  $region3: #{conv_forward.1} parent=0 // loop_header
    %s9 = sphi 0, %s13
    %p10 = scmp.ge.s32.totalorder %s9, 6
    %s16 = sphi 0, %s35
    %s17 = sphi 0, %s31
    %s18 = sphi 0, %s27
    %s19 = sphi 0, %s16
    %s20 = sphi 0, %s17
    %s21 = sphi 0, %s18
    %s22 = sphi 0, %s19
    %s23 = sphi 0, %s20
    %s24 = sphi 0, %s21
    %s40 = sphi 0, %s42
    %s43 = sphi 0, %s40
    %s44 = sphi 0, %s43
    %s60 = sphi 0, %s44
    %s66 = sphi 0, %s68
    %s69 = sphi 0, %s66
    %s70 = sphi 0, %s69
    %s86 = sphi 0, %s70
    %s92 = sphi 0, %s94
    %s95 = sphi 0, %s92
    %s96 = sphi 0, %s95
    %s112 = sphi 0, %s96
    %s122 = sphi 0, %s124
    %s125 = sphi 0, %s122
    %s126 = sphi 0, %s125
    %s142 = sphi 0, %s126
  $region4: #{conv_forward.1} parent=0 // loop_header_branch
    %12 = sbr.rel (%p10) target = $region8
  $region5: #{conv_forward.1} parent=0 // loop_body
    %s14 = ssub.s32 %s9, 1
    %s15 = ssub.s32 %s9, 2
    %s25 = sadd.s32 1, %s18
    %p26 = scmp.ge.s32.totalorder %s25, 1
    %s27 = scalar_select %p26, 0, %s25
    %s28 = sadd.s32 1, %s17
    %s29 = scalar_select %p26, %s28, %s17
    %p30 = scmp.ge.s32.totalorder %s29, 2
    %s31 = scalar_select %p30, 0, %s29
    %s32 = sadd.s32 1, %s16
    %s33 = scalar_select %p30, %s32, %s16
    %p34 = scmp.ge.s32.totalorder %s33, 2
    %s35 = scalar_select %p34, 0, %s33
    %s36 = ssub.s32 %s16, %s35
    %s37 = ssub.s32 %s17, %s31
    %s38 = sor.u32 %s36, %s37
    %p39 = scmp.eq.s32.totalorder %s38, 0
    %s41 = sadd.s32 %s40, 1
    %s42 = scalar_select %p39, %s40, %s41
    %p45 = pneg %p39
    %p46 = scmp.eq.s32.totalorder %s9, 3
    %p47 = por %p45, %p46
    %p48 = scmp.ne.s32.totalorder %s40, %s43
    %p49 = scmp.eq.s32.totalorder %s9, 0
    %p50 = por %p48, %p49
    %p51 = scmp.ne.s32.totalorder %s40, %s43
    %p52 = scmp.eq.s32.totalorder %s14, 3
    %p53 = por %p51, %p52
    %p54 = scmp.ne.s32.totalorder %s43, %s44
    %p55 = scmp.eq.s32.totalorder %s14, 0
    %p56 = por %p54, %p55
    %p57 = scmp.ne.s32.totalorder %s43, %s44
    %p58 = scmp.eq.s32.totalorder %s15, 3
    %p59 = por %p57, %p58
    %p61 = scmp.ne.s32.totalorder %s44, %s60
    %p62 = scmp.eq.s32.totalorder %s15, 0
    %p63 = por %p61, %p62
    %s64 = ssub.s32 %s18, %s27
    %p65 = scmp.eq.s32.totalorder %s64, 0
    %s67 = sadd.s32 %s66, 1
    %s68 = scalar_select %p65, %s66, %s67
    %p71 = pneg %p65
    %p72 = scmp.eq.s32.totalorder %s9, 3
    %p73 = por %p71, %p72
    %p74 = scmp.ne.s32.totalorder %s66, %s69
    %p75 = scmp.eq.s32.totalorder %s9, 0
    %p76 = por %p74, %p75
    %p77 = scmp.ne.s32.totalorder %s66, %s69
    %p78 = scmp.eq.s32.totalorder %s14, 3
    %p79 = por %p77, %p78
    %p80 = scmp.ne.s32.totalorder %s69, %s70
    %p81 = scmp.eq.s32.totalorder %s14, 0
    %p82 = por %p80, %p81
    %p83 = scmp.ne.s32.totalorder %s69, %s70
    %p84 = scmp.eq.s32.totalorder %s15, 3
    %p85 = por %p83, %p84
    %p87 = scmp.ne.s32.totalorder %s70, %s86
    %p88 = scmp.eq.s32.totalorder %s15, 0
    %p89 = por %p87, %p88
    %s90 = ssub.s32 %s18, %s27
    %p91 = scmp.eq.s32.totalorder %s90, 0
    %s93 = sadd.s32 %s92, 1
    %s94 = scalar_select %p91, %s92, %s93
    %p97 = pneg %p91
    %p98 = scmp.eq.s32.totalorder %s9, 3
    %p99 = por %p97, %p98
    %p100 = scmp.ne.s32.totalorder %s92, %s95
    %p101 = scmp.eq.s32.totalorder %s9, 0
    %p102 = por %p100, %p101
    %p103 = scmp.ne.s32.totalorder %s92, %s95
    %p104 = scmp.eq.s32.totalorder %s14, 3
    %p105 = por %p103, %p104
    %p106 = scmp.ne.s32.totalorder %s95, %s96
    %p107 = scmp.eq.s32.totalorder %s14, 0
    %p108 = por %p106, %p107
    %p109 = scmp.ne.s32.totalorder %s95, %s96
    %p110 = scmp.eq.s32.totalorder %s15, 3
    %p111 = por %p109, %p110
    %p113 = scmp.ne.s32.totalorder %s96, %s112
    %p114 = scmp.eq.s32.totalorder %s15, 0
    %p115 = por %p113, %p114
    %s116 = ssub.s32 %s16, %s35
    %s117 = ssub.s32 %s17, %s31
    %s118 = sor.u32 %s116, %s117
    %s119 = ssub.s32 %s18, %s27
    %s120 = sor.u32 %s118, %s119
    %p121 = scmp.eq.s32.totalorder %s120, 0
    %s123 = sadd.s32 %s122, 1
    %s124 = scalar_select %p121, %s122, %s123
    %p127 = pneg %p121
    %p128 = scmp.eq.s32.totalorder %s9, 3
    %p129 = por %p127, %p128
    %p130 = scmp.ne.s32.totalorder %s122, %s125
    %p131 = scmp.eq.s32.totalorder %s9, 0
    %p132 = por %p130, %p131
    %p133 = scmp.ne.s32.totalorder %s122, %s125
    %p134 = scmp.eq.s32.totalorder %s14, 3
    %p135 = por %p133, %p134
    %p136 = scmp.ne.s32.totalorder %s125, %s126
    %p137 = scmp.eq.s32.totalorder %s14, 0
    %p138 = por %p136, %p137
    %p139 = scmp.ne.s32.totalorder %s125, %s126
    %p140 = scmp.eq.s32.totalorder %s15, 3
    %p141 = por %p139, %p140
    %p143 = scmp.ne.s32.totalorder %s126, %s142
    %p144 = scmp.eq.s32.totalorder %s15, 0
    %p145 = por %p143, %p144
    %p146 = scmp.le.s32.totalorder 1, %s9
    %p147 = scmp.lt.s32.totalorder %s9, 5
    %p148 = pnand %p146, %p147
    %p149 = pneg %p148
    // Predicated region
    $region9: #{conv_forward.1} parent=5 // pred_check
      _
    $region10: #{conv_forward.1} parent=5 // pred_check_branch
      %151 = sbr.rel (%p148) target = $region12
    $region11: #{conv_forward.1} parent=5 // pred_region
      %s152 = ssub.s32 %s9, 1
      // Predicated region
      $region13: #{conv_forward.1} parent=11 // pred_check
        %p153 = pneg %p82
      $region14: #{conv_forward.1} parent=11 // pred_check_branch
        %155 = sbr.rel (%p153) target = $region16
      $region15: #{conv_forward.1} parent=11 // pred_region
        %p156 = scmp.lt.s32.totalorder %s21, 0
        %s157 = scalar_select %p156, %s21, 0
        %s158 = smul.addr %s157, 4
        %s159 = scalar_lea.vmem %s1, %s158
      $region16: #{conv_forward.1} parent=11 // pred_fallthru
        _
      // Predicated region
      $region17: #{conv_forward.1} parent=11 // pred_check
        %p160 = pneg %p108
      $region18: #{conv_forward.1} parent=11 // pred_check_branch
        %162 = sbr.rel (%p160) target = $region20
      $region19: #{conv_forward.1} parent=11 // pred_region
        %p163 = scmp.lt.s32.totalorder %s21, 0
        %s164 = scalar_select %p163, %s21, 0
        %s165 = scalar_lea.vmem %s2, %s164
      $region20: #{conv_forward.1} parent=11 // pred_fallthru
        _
    $region12: #{conv_forward.1} parent=5 // pred_fallthru
      _
    %p166 = scmp.lt.s32.totalorder %s9, 4
    // Predicated region
    $region21: #{conv_forward.1} parent=5 // pred_check
      %p167 = pneg %p166
    $region22: #{conv_forward.1} parent=5 // pred_check_branch
      %169 = sbr.rel (%p167) target = $region24
    $region23: #{conv_forward.1} parent=5 // pred_region
      // Predicated region
      $region25: #{conv_forward.1} parent=23 // pred_check
        %p170 = pneg %p50
      $region26: #{conv_forward.1} parent=23 // pred_check_branch
        %172 = sbr.rel (%p170) target = $region28
      $region27: #{conv_forward.1} parent=23 // pred_region
        %p173 = scmp.lt.s32.totalorder %s16, 1
        %s174 = scalar_select %p173, %s16, 1
        %p175 = scmp.lt.s32.totalorder %s17, 1
        %s176 = scalar_select %p175, %s17, 1
        %s177 = smul.addr %s176, 30
        %s178 = smul.addr %s174, 60
        %s179 = sadd.s32 %s177, %s178
        %s180 = smul.addr %s179, 4
        %s181 = scalar_lea.vmem %s0, %s180
      $region28: #{conv_forward.1} parent=23 // pred_fallthru
        _
    $region24: #{conv_forward.1} parent=5 // pred_fallthru
      _
    %p182 = scmp.le.s32.totalorder 1, %s9
    %p183 = scmp.lt.s32.totalorder %s9, 5
    %p184 = pnand %p182, %p183
    %p185 = pneg %p184
    // Predicated region
    $region29: #{conv_forward.1} parent=5 // pred_check
      _
    $region30: #{conv_forward.1} parent=5 // pred_check_branch
      %187 = sbr.rel (%p184) target = $region32
    $region31: #{conv_forward.1} parent=5 // pred_region
      %s188 = ssub.s32 %s9, 1
      %p189 = scmp.lt.s32.totalorder %s19, 1
      %s190 = scalar_select %p189, %s19, 1
      %p191 = scmp.lt.s32.totalorder %s20, 1
      %s192 = scalar_select %p191, %s20, 1
      %s193 = smul.addr %s192, 30
      %s194 = smul.addr %s190, 60
      %s195 = sadd.s32 %s193, %s194
      %s196 = smul.addr %s195, 4
      %s197 = scalar_lea.vmem %s0, %s196
      %p198 = pneg %p56
      %p199 = pneg %p53
      %p200 = scmp.lt.s32.totalorder %s21, 0
      %s201 = scalar_select %p200, %s21, 0
      %s202 = smul.addr %s201, 4
      %s203 = scalar_lea.vmem %s1, %s202
      %p204 = pneg %p82
      %p205 = pneg %p79
      %p206 = scmp.lt.s32.totalorder %s21, 0
      %s207 = scalar_select %p206, %s21, 0
      %s208 = scalar_lea.vmem %s2, %s207
      %p209 = pneg %p108
      %p210 = pneg %p105
      %p211 = pneg %p138
      %p212 = pneg %p135
      %s213 = smul.u32 8, %s20
      %p214 = scmp.lt.s32.totalorder %s19, 1
      %s215 = scalar_select %p214, %s19, 1
      %p216 = scmp.lt.s32.totalorder %s213, 15
      %s217 = scalar_select %p216, %s213, 15
      %p218 = scmp.lt.s32.totalorder %s21, 0
      %s219 = scalar_select %p218, %s21, 0
      %s220 = smul.addr %s217, 2
      %s221 = sadd.s32 %s219, %s220
      %s222 = smul.addr %s215, 32
      %s223 = sadd.s32 %s221, %s222
      %s224 = smul.addr %s223, 8
      %s225 = scalar_lea.vmem %s3, %s224
      %p226 = scmp.lt.s32.totalorder %s19, 1
      %s227 = scalar_select %p226, %s19, 1
      %p228 = scmp.lt.s32.totalorder %s20, 1
      %s229 = scalar_select %p228, %s20, 1
      %s230 = smul.addr %s229, 30
      %s231 = smul.addr %s227, 60
      %s232 = sadd.s32 %s230, %s231
      %s233 = smul.addr %s232, 4
      %s234 = scalar_lea.vmem %s0, %s233
      %p235 = scmp.lt.s32.totalorder %s21, 0
      %s236 = scalar_select %p235, %s21, 0
      %s237 = smul.addr %s236, 4
      %s238 = scalar_lea.vmem %s1, %s237
      %p239 = scmp.lt.s32.totalorder %s21, 0
      %s240 = scalar_select %p239, %s21, 0
      %s241 = scalar_lea.vmem %s2, %s240
      %s242 = smul.u32 8, %s20
      %p243 = scmp.lt.s32.totalorder %s19, 1
      %s244 = scalar_select %p243, %s19, 1
      %p245 = scmp.lt.s32.totalorder %s242, 15
      %s246 = scalar_select %p245, %s242, 15
      %p247 = scmp.lt.s32.totalorder %s21, 0
      %s248 = scalar_select %p247, %s21, 0
      %s249 = smul.addr %s246, 2
      %s250 = sadd.s32 %s248, %s249
      %s251 = smul.addr %s244, 32
      %s252 = sadd.s32 %s250, %s251
      %s253 = smul.addr %s252, 8
      %s254 = scalar_lea.vmem %s3, %s253
      %s255 = smul.u32 8, %s20
      %v257 = vld [vmem:[%s234] sm:$0xf]
      %v258 = vld [vmem:[%s234 + $0x4] sm:$0xf]
      %v259 = vld [vmem:[%s234 + $0x8] sm:$0x1]
      %v260 = vld [vmem:[%s234 + $0xc] sm:$0xf]
      %v261 = vld [vmem:[%s234 + $0x10] sm:$0xf]
      %v262 = vld [vmem:[%s234 + $0x14] sm:$0x1]
      %v263 = vld [vmem:[%s234 + $0x18] sm:$0xf]
      %v264 = vld [vmem:[%s234 + $0x1c] sm:$0xf]
      %v265 = vld [vmem:[%s234 + $0x20] sm:$0x1]
      %v266 = vld [vmem:[%s234 + $0x24] sm:$0xf]
      %v267 = vld [vmem:[%s234 + $0x28] sm:$0xf]
      %v268 = vld [vmem:[%s234 + $0x2c] sm:$0x1]
      %v269 = vld [vmem:[%s234 + $0x30] sm:$0xf]
      %v270 = vld [vmem:[%s234 + $0x34] sm:$0xf]
      %v271 = vld [vmem:[%s234 + $0x38] sm:$0x1]
      %v272 = vld [vmem:[%s234 + $0x3c] sm:$0xf]
      %v273 = vld [vmem:[%s234 + $0x40] sm:$0xf]
      %v274 = vld [vmem:[%s234 + $0x44] sm:$0x1]
      %v275 = vld [vmem:[%s234 + $0x48] sm:$0xf]
      %v276 = vld [vmem:[%s234 + $0x4c] sm:$0xf]
      %v277 = vld [vmem:[%s234 + $0x50] sm:$0x1]
      %v278 = vld [vmem:[%s234 + $0x54] sm:$0xf]
      %v279 = vld [vmem:[%s234 + $0x58] sm:$0xf]
      %v280 = vld [vmem:[%s234 + $0x5c] sm:$0x1]
      %v281 = vld [vmem:[%s234 + $0x60] sm:$0xf]
      %v282 = vld [vmem:[%s234 + $0x64] sm:$0xf]
      %v283 = vld [vmem:[%s234 + $0x68] sm:$0x1]
      %v284 = vld [vmem:[%s234 + $0x6c] sm:$0xf]
      %v285 = vld [vmem:[%s234 + $0x70] sm:$0xf]
      %v286 = vld [vmem:[%s234 + $0x74] sm:$0x1]
      %v307 = vunpack.c.l.b16 %v257
      %v308 = vunpack.c.l.b16 %v258
      %v309 = vunpack.c.l.b16 %v260
      %v310 = vunpack.c.l.b16 %v261
      %v311 = vunpack.c.l.b16 %v263
      %v312 = vunpack.c.l.b16 %v264
      %v313 = vunpack.c.l.b16 %v266
      %v314 = vunpack.c.l.b16 %v267
      %v315 = vunpack.c.l.b16 %v269
      %v316 = vunpack.c.l.b16 %v270
      %v317 = vunpack.c.l.b16 %v272
      %v318 = vunpack.c.l.b16 %v273
      %v319 = vunpack.c.l.b16 %v275
      %v320 = vunpack.c.l.b16 %v276
      %v321 = vunpack.c.l.b16 %v278
      %v322 = vunpack.c.l.b16 %v279
      %v323 = vunpack.c.l.b16 %v281
      %v324 = vunpack.c.l.b16 %v282
      %v325 = vunpack.c.l.b16 %v284
      %v326 = vunpack.c.l.b16 %v285
      %v327 = vpack.c.b16 %v308, %v307
      %v328 = vpack.c.b16 %v310, %v309
      %v329 = vpack.c.b16 %v312, %v311
      %v330 = vpack.c.b16 %v314, %v313
      %v331 = vpack.c.b16 %v316, %v315
      %v332 = vpack.c.b16 %v318, %v317
      %v333 = vpack.c.b16 %v320, %v319
      %v334 = vpack.c.b16 %v322, %v321
      %v335 = vpack.c.b16 %v324, %v323
      %v336 = vpack.c.b16 %v326, %v325
      %v347 = vunpack.c.l.b16 %v259
      %v348 = vunpack.c.l.b16 %v262
      %v349 = vunpack.c.l.b16 %v265
      %v350 = vunpack.c.l.b16 %v268
      %v351 = vunpack.c.l.b16 %v271
      %v352 = vunpack.c.l.b16 %v274
      %v353 = vunpack.c.l.b16 %v277
      %v354 = vunpack.c.l.b16 %v280
      %v355 = vunpack.c.l.b16 %v283
      %v356 = vunpack.c.l.b16 %v286
      %v357 = vpack.c.b16 %v347, %v347
      %v358 = vpack.c.b16 %v348, %v348
      %v359 = vpack.c.b16 %v349, %v349
      %v360 = vpack.c.b16 %v350, %v350
      %v361 = vpack.c.b16 %v351, %v351
      %v362 = vpack.c.b16 %v352, %v352
      %v363 = vpack.c.b16 %v353, %v353
      %v364 = vpack.c.b16 %v354, %v354
      %v365 = vpack.c.b16 %v355, %v355
      %v366 = vpack.c.b16 %v356, %v356
      %vm367 = vsmask.f32 7424
      %v369 = vshrl.u32 %v327, 16
      %v371 = vshll.u32 %v327, 16
      %v373 = vrot.slane %v371, 1
      %v374 = vor.u32 %v369, %v373
      %v376 = vshll.u32 %v357, 16
      %v378 = vrot.slane %v376, 1
      %v379 = vsel %vm367, %v374, %v378
      %v381 = vshrl.u32 %v328, 16
      %v383 = vshll.u32 %v328, 16
      %v385 = vrot.slane %v383, 1
      %v386 = vor.u32 %v381, %v385
      %v388 = vshll.u32 %v358, 16
      %v390 = vrot.slane %v388, 1
      %v391 = vsel %vm367, %v386, %v390
      %v393 = vshrl.u32 %v329, 16
      %v395 = vshll.u32 %v329, 16
      %v397 = vrot.slane %v395, 1
      %v398 = vor.u32 %v393, %v397
      %v400 = vshll.u32 %v359, 16
      %v402 = vrot.slane %v400, 1
      %v403 = vsel %vm367, %v398, %v402
      %v405 = vshrl.u32 %v330, 16
      %v407 = vshll.u32 %v330, 16
      %v409 = vrot.slane %v407, 1
      %v410 = vor.u32 %v405, %v409
      %v412 = vshll.u32 %v360, 16
      %v414 = vrot.slane %v412, 1
      %v415 = vsel %vm367, %v410, %v414
      %v417 = vshrl.u32 %v331, 16
      %v419 = vshll.u32 %v331, 16
      %v421 = vrot.slane %v419, 1
      %v422 = vor.u32 %v417, %v421
      %v424 = vshll.u32 %v361, 16
      %v426 = vrot.slane %v424, 1
      %v427 = vsel %vm367, %v422, %v426
      %v429 = vshrl.u32 %v332, 16
      %v431 = vshll.u32 %v332, 16
      %v433 = vrot.slane %v431, 1
      %v434 = vor.u32 %v429, %v433
      %v436 = vshll.u32 %v362, 16
      %v438 = vrot.slane %v436, 1
      %v439 = vsel %vm367, %v434, %v438
      %v441 = vshrl.u32 %v333, 16
      %v443 = vshll.u32 %v333, 16
      %v445 = vrot.slane %v443, 1
      %v446 = vor.u32 %v441, %v445
      %v448 = vshll.u32 %v363, 16
      %v450 = vrot.slane %v448, 1
      %v451 = vsel %vm367, %v446, %v450
      %v453 = vshrl.u32 %v334, 16
      %v455 = vshll.u32 %v334, 16
      %v457 = vrot.slane %v455, 1
      %v458 = vor.u32 %v453, %v457
      %v460 = vshll.u32 %v364, 16
      %v462 = vrot.slane %v460, 1
      %v463 = vsel %vm367, %v458, %v462
      %v465 = vshrl.u32 %v335, 16
      %v467 = vshll.u32 %v335, 16
      %v469 = vrot.slane %v467, 1
      %v470 = vor.u32 %v465, %v469
      %v472 = vshll.u32 %v365, 16
      %v474 = vrot.slane %v472, 1
      %v475 = vsel %vm367, %v470, %v474
      %v477 = vshrl.u32 %v336, 16
      %v479 = vshll.u32 %v336, 16
      %v481 = vrot.slane %v479, 1
      %v482 = vor.u32 %v477, %v481
      %v484 = vshll.u32 %v366, 16
      %v486 = vrot.slane %v484, 1
      %v487 = vsel %vm367, %v482, %v486
      %488 = vrot.lane.b32.xlu0 %v379, 8
      %v489 = vpop.permute.xlu0 %488
      %490 = vrot.lane.b32.xlu0 %v391, 8
      %v491 = vpop.permute.xlu0 %490
      %492 = vrot.lane.b32.xlu0 %v403, 8
      %v493 = vpop.permute.xlu0 %492
      %494 = vrot.lane.b32.xlu0 %v415, 8
      %v495 = vpop.permute.xlu0 %494
      %496 = vrot.lane.b32.xlu0 %v427, 8
      %v497 = vpop.permute.xlu0 %496
      %498 = vrot.lane.b32.xlu0 %v439, 8
      %v499 = vpop.permute.xlu0 %498
      %500 = vrot.lane.b32.xlu0 %v451, 8
      %v501 = vpop.permute.xlu0 %500
      %502 = vrot.lane.b32.xlu0 %v463, 8
      %v503 = vpop.permute.xlu0 %502
      %504 = vrot.lane.b32.xlu0 %v475, 8
      %v505 = vpop.permute.xlu0 %504
      %506 = vrot.lane.b32.xlu0 %v487, 8
      %v507 = vpop.permute.xlu0 %506
      %vm508 = vcmask 1046528
      %v509 = vrot.slane %v327, 1
      %v510 = vrot.slane %v357, 1
      %v511 = vsel %vm508, %v509, %v510
      %v512 = vrot.slane %v328, 1
      %v513 = vrot.slane %v358, 1
      %v514 = vsel %vm508, %v512, %v513
      %v515 = vrot.slane %v329, 1
      %v516 = vrot.slane %v359, 1
      %v517 = vsel %vm508, %v515, %v516
      %v518 = vrot.slane %v330, 1
      %v519 = vrot.slane %v360, 1
      %v520 = vsel %vm508, %v518, %v519
      %v521 = vrot.slane %v331, 1
      %v522 = vrot.slane %v361, 1
      %v523 = vsel %vm508, %v521, %v522
      %v524 = vrot.slane %v332, 1
      %v525 = vrot.slane %v362, 1
      %v526 = vsel %vm508, %v524, %v525
      %v527 = vrot.slane %v333, 1
      %v528 = vrot.slane %v363, 1
      %v529 = vsel %vm508, %v527, %v528
      %v530 = vrot.slane %v334, 1
      %v531 = vrot.slane %v364, 1
      %v532 = vsel %vm508, %v530, %v531
      %v533 = vrot.slane %v335, 1
      %v534 = vrot.slane %v365, 1
      %v535 = vsel %vm508, %v533, %v534
      %v536 = vrot.slane %v336, 1
      %v537 = vrot.slane %v366, 1
      %v538 = vsel %vm508, %v536, %v537
      %539 = vrot.lane.b32.xlu0 %v511, 16
      %v540 = vpop.permute.xlu0 %539
      %541 = vrot.lane.b32.xlu0 %v514, 16
      %v542 = vpop.permute.xlu0 %541
      %543 = vrot.lane.b32.xlu0 %v517, 16
      %v544 = vpop.permute.xlu0 %543
      %545 = vrot.lane.b32.xlu0 %v520, 16
      %v546 = vpop.permute.xlu0 %545
      %547 = vrot.lane.b32.xlu0 %v523, 16
      %v548 = vpop.permute.xlu0 %547
      %549 = vrot.lane.b32.xlu0 %v526, 16
      %v550 = vpop.permute.xlu0 %549
      %551 = vrot.lane.b32.xlu0 %v529, 16
      %v552 = vpop.permute.xlu0 %551
      %553 = vrot.lane.b32.xlu0 %v532, 16
      %v554 = vpop.permute.xlu0 %553
      %555 = vrot.lane.b32.xlu0 %v535, 16
      %v556 = vpop.permute.xlu0 %555
      %557 = vrot.lane.b32.xlu0 %v538, 16
      %v558 = vpop.permute.xlu0 %557
      %vm559 = vcmask 64512
      %v561 = vsel %vm559, %v327, %v489
      %v563 = vsel %vm559, %v328, %v491
      %v565 = vsel %vm559, %v329, %v493
      %v567 = vsel %vm559, %v330, %v495
      %v569 = vsel %vm559, %v331, %v497
      %v571 = vsel %vm559, %v332, %v499
      %v573 = vsel %vm559, %v333, %v501
      %v575 = vsel %vm559, %v334, %v503
      %v577 = vsel %vm559, %v335, %v505
      %v579 = vsel %vm559, %v336, %v507
      %vm580 = vcmask 130048
      %v582 = vsel %vm580, %v561, %v540
      %v584 = vsel %vm580, %v563, %v542
      %v586 = vsel %vm580, %v565, %v544
      %v588 = vsel %vm580, %v567, %v546
      %v590 = vsel %vm580, %v569, %v548
      %v592 = vsel %vm580, %v571, %v550
      %v594 = vsel %vm580, %v573, %v552
      %v596 = vsel %vm580, %v575, %v554
      %v598 = vsel %vm580, %v577, %v556
      %v600 = vsel %vm580, %v579, %v558
      %v601 = vld [vmem:[%s238] sm:$0xf]
      %v602 = vld [vmem:[%s238 + $0x4] sm:$0xf]
      %v603 = vld [vmem:[%s238 + $0x8] sm:$0xf]
      %s604 = scalar_lea.vmem %s238, 12
      %v605 = vld [vmem:[%s604] sm:$0xf]
      %v606 = vld [vmem:[%s604 + $0x4] sm:$0xf]
      %v607 = vld [vmem:[%s604 + $0x8] sm:$0xf]
      %v611 = vunpack.c.l.b16 %v605
      %v612 = vunpack.c.l.b16 %v606
      %v613 = vunpack.c.l.b16 %v607
      %v614 = vpack.c.b16 %v612, %v611
      %v615 = vpack.c.b16 %v613, %v613
      %vm617 = vcmask 195584
      %v618 = vsel %vm617, %v584, 0
      %v620 = vsel %vm617, %v586, 0
      %v622 = vsel %vm617, %v588, 0
      %v624 = vsel %vm617, %v590, 0
      %v626 = vsel %vm617, %v592, 0
      %v628 = vsel %vm617, %v594, 0
      %v630 = vsel %vm617, %v596, 0
      %v632 = vsel %vm617, %v598, 0
      %vm634 = vcmask 1043456
      %v636 = vsel %vm634, %v615, 0
      %638 = vmatpush.bf16.msra.mxu0 0
      %639 = vmatpush.bf16.msra.mxu0 0
      %640 = vmatpush.bf16.msra.mxu0 0
      %641 = vmatpush.bf16.msra.mxu0 0
      %642 = vmatpush.bf16.msra.mxu0 0
      %643 = vmatpush.bf16.msra.mxu0 0
      %644 = vmatpush.bf16.msra.mxu0 %v636
      %645 = vmatpush.bf16.msra.mxu0 %v614
      %646 = vmatmul.bf16.gmra.mxu0 %v618
      %v647 = vpop.f32.mrf.mxu0
      %v648 = vadd.f32 0.0, %v647
      %v649 = vpop.f32.mrf.mxu0
      %v650 = vadd.f32 0.0, %v649
      %651 = vmatmul.bf16.gmra.mxu0 %v620
      %v652 = vpop.f32.mrf.mxu0
      %v653 = vadd.f32 0.0, %v652
      %v654 = vpop.f32.mrf.mxu0
      %v655 = vadd.f32 0.0, %v654
      %656 = vmatmul.bf16.gmra.mxu0 %v622
      %v657 = vpop.f32.mrf.mxu0
      %v658 = vadd.f32 0.0, %v657
      %v659 = vpop.f32.mrf.mxu0
      %v660 = vadd.f32 0.0, %v659
      %661 = vmatmul.bf16.gmra.mxu0 %v624
      %v662 = vpop.f32.mrf.mxu0
      %v663 = vadd.f32 0.0, %v662
      %v664 = vpop.f32.mrf.mxu0
      %v665 = vadd.f32 0.0, %v664
      %666 = vmatmul.bf16.gmra.mxu0 %v626
      %v667 = vpop.f32.mrf.mxu0
      %v668 = vadd.f32 0.0, %v667
      %v669 = vpop.f32.mrf.mxu0
      %v670 = vadd.f32 0.0, %v669
      %671 = vmatmul.bf16.gmra.mxu0 %v628
      %v672 = vpop.f32.mrf.mxu0
      %v673 = vadd.f32 0.0, %v672
      %v674 = vpop.f32.mrf.mxu0
      %v675 = vadd.f32 0.0, %v674
      %676 = vmatmul.bf16.gmra.mxu0 %v630
      %v677 = vpop.f32.mrf.mxu0
      %v678 = vadd.f32 0.0, %v677
      %v679 = vpop.f32.mrf.mxu0
      %v680 = vadd.f32 0.0, %v679
      %681 = vmatmul.bf16.gmra.mxu0 %v632
      %v682 = vpop.f32.mrf.mxu0
      %v683 = vadd.f32 0.0, %v682
      %v684 = vpop.f32.mrf.mxu0
      %v685 = vadd.f32 0.0, %v684
      %686 = vdwg.mxu0
      %v690 = vunpack.c.l.b16 %v601
      %v691 = vunpack.c.l.b16 %v602
      %v692 = vunpack.c.l.b16 %v603
      %v693 = vpack.c.b16 %v691, %v690
      %v694 = vpack.c.b16 %v692, %v692
      %v696 = vsel %vm617, %v582, 0
      %v699 = vsel %vm634, %v694, 0
      %701 = vmatpush.bf16.msra.mxu0 0
      %702 = vmatpush.bf16.msra.mxu0 0
      %703 = vmatpush.bf16.msra.mxu0 0
      %704 = vmatpush.bf16.msra.mxu0 0
      %705 = vmatpush.bf16.msra.mxu0 0
      %706 = vmatpush.bf16.msra.mxu0 0
      %707 = vmatpush.bf16.msra.mxu0 %v699
      %708 = vmatpush.bf16.msra.mxu0 %v693
      %709 = vmatmul.bf16.gmra.mxu0 %v696
      %v710 = vpop.f32.mrf.mxu0
      %v711 = vadd.f32 %v648, %v710
      %v712 = vpop.f32.mrf.mxu0
      %v713 = vadd.f32 %v650, %v712
      %714 = vmatmul.bf16.gmra.mxu0 %v618
      %v715 = vpop.f32.mrf.mxu0
      %v716 = vadd.f32 %v653, %v715
      %v717 = vpop.f32.mrf.mxu0
      %v718 = vadd.f32 %v655, %v717
      %719 = vmatmul.bf16.gmra.mxu0 %v620
      %v720 = vpop.f32.mrf.mxu0
      %v721 = vadd.f32 %v658, %v720
      %v722 = vpop.f32.mrf.mxu0
      %v723 = vadd.f32 %v660, %v722
      %724 = vmatmul.bf16.gmra.mxu0 %v622
      %v725 = vpop.f32.mrf.mxu0
      %v726 = vadd.f32 %v663, %v725
      %v727 = vpop.f32.mrf.mxu0
      %v728 = vadd.f32 %v665, %v727
      %729 = vmatmul.bf16.gmra.mxu0 %v624
      %v730 = vpop.f32.mrf.mxu0
      %v731 = vadd.f32 %v668, %v730
      %v732 = vpop.f32.mrf.mxu0
      %v733 = vadd.f32 %v670, %v732
      %734 = vmatmul.bf16.gmra.mxu0 %v626
      %v735 = vpop.f32.mrf.mxu0
      %v736 = vadd.f32 %v673, %v735
      %v737 = vpop.f32.mrf.mxu0
      %v738 = vadd.f32 %v675, %v737
      %739 = vmatmul.bf16.gmra.mxu0 %v628
      %v740 = vpop.f32.mrf.mxu0
      %v741 = vadd.f32 %v678, %v740
      %v742 = vpop.f32.mrf.mxu0
      %v743 = vadd.f32 %v680, %v742
      %744 = vmatmul.bf16.gmra.mxu0 %v630
      %v745 = vpop.f32.mrf.mxu0
      %v746 = vadd.f32 %v683, %v745
      %v747 = vpop.f32.mrf.mxu0
      %v748 = vadd.f32 %v685, %v747
      %749 = vdwg.mxu0
      %s750 = scalar_lea.vmem %s238, 24
      %v751 = vld [vmem:[%s750] sm:$0xf]
      %v752 = vld [vmem:[%s750 + $0x4] sm:$0xf]
      %v753 = vld [vmem:[%s750 + $0x8] sm:$0xf]
      %v757 = vunpack.c.l.b16 %v751
      %v758 = vunpack.c.l.b16 %v752
      %v759 = vunpack.c.l.b16 %v753
      %v760 = vpack.c.b16 %v758, %v757
      %v761 = vpack.c.b16 %v759, %v759
      %v763 = vsel %vm617, %v600, 0
      %v766 = vsel %vm634, %v761, 0
      %768 = vmatpush.bf16.msra.mxu0 0
      %769 = vmatpush.bf16.msra.mxu0 0
      %770 = vmatpush.bf16.msra.mxu0 0
      %771 = vmatpush.bf16.msra.mxu0 0
      %772 = vmatpush.bf16.msra.mxu0 0
      %773 = vmatpush.bf16.msra.mxu0 0
      %774 = vmatpush.bf16.msra.mxu0 %v766
      %775 = vmatpush.bf16.msra.mxu0 %v760
      %776 = vmatmul.bf16.gmra.mxu0 %v620
      %v777 = vpop.f32.mrf.mxu0
      %v778 = vadd.f32 0.0, %v777
      %v779 = vpop.f32.mrf.mxu0
      %v780 = vadd.f32 0.0, %v779
      %781 = vmatmul.bf16.gmra.mxu0 %v622
      %v782 = vpop.f32.mrf.mxu0
      %v783 = vadd.f32 0.0, %v782
      %v784 = vpop.f32.mrf.mxu0
      %v785 = vadd.f32 0.0, %v784
      %786 = vmatmul.bf16.gmra.mxu0 %v624
      %v787 = vpop.f32.mrf.mxu0
      %v788 = vadd.f32 0.0, %v787
      %v789 = vpop.f32.mrf.mxu0
      %v790 = vadd.f32 0.0, %v789
      %791 = vmatmul.bf16.gmra.mxu0 %v626
      %v792 = vpop.f32.mrf.mxu0
      %v793 = vadd.f32 0.0, %v792
      %v794 = vpop.f32.mrf.mxu0
      %v795 = vadd.f32 0.0, %v794
      %796 = vmatmul.bf16.gmra.mxu0 %v628
      %v797 = vpop.f32.mrf.mxu0
      %v798 = vadd.f32 0.0, %v797
      %v799 = vpop.f32.mrf.mxu0
      %v800 = vadd.f32 0.0, %v799
      %801 = vmatmul.bf16.gmra.mxu0 %v630
      %v802 = vpop.f32.mrf.mxu0
      %v803 = vadd.f32 0.0, %v802
      %v804 = vpop.f32.mrf.mxu0
      %v805 = vadd.f32 0.0, %v804
      %806 = vmatmul.bf16.gmra.mxu0 %v632
      %v807 = vpop.f32.mrf.mxu0
      %v808 = vadd.f32 0.0, %v807
      %v809 = vpop.f32.mrf.mxu0
      %v810 = vadd.f32 0.0, %v809
      %811 = vmatmul.bf16.gmra.mxu0 %v763
      %v812 = vpop.f32.mrf.mxu0
      %v813 = vadd.f32 0.0, %v812
      %v814 = vpop.f32.mrf.mxu0
      %v815 = vadd.f32 0.0, %v814
      %816 = vdwg.mxu0
      %v817 = vadd.f32 %v711, %v778
      %v818 = vadd.f32 %v713, %v780
      %v819 = vadd.f32 %v716, %v783
      %v820 = vadd.f32 %v718, %v785
      %v821 = vadd.f32 %v721, %v788
      %v822 = vadd.f32 %v723, %v790
      %v823 = vadd.f32 %v726, %v793
      %v824 = vadd.f32 %v728, %v795
      %v825 = vadd.f32 %v731, %v798
      %v826 = vadd.f32 %v733, %v800
      %v827 = vadd.f32 %v736, %v803
      %v828 = vadd.f32 %v738, %v805
      %v829 = vadd.f32 %v741, %v808
      %v830 = vadd.f32 %v743, %v810
      %v831 = vadd.f32 %v746, %v813
      %v832 = vadd.f32 %v748, %v815
      %v833 = vld [vmem:[%s241] sm:$0x1]
      %v835 = vperm.slane %v833, 0
      %v837 = vadd.f32 %v817, %v835
      %v838 = vadd.f32 %v818, %v835
      %v839 = vadd.f32 %v819, %v835
      %v840 = vadd.f32 %v820, %v835
      %v841 = vadd.f32 %v821, %v835
      %v842 = vadd.f32 %v822, %v835
      %v843 = vadd.f32 %v823, %v835
      %v844 = vadd.f32 %v824, %v835
      %v845 = vadd.f32 %v825, %v835
      %v846 = vadd.f32 %v826, %v835
      %v847 = vadd.f32 %v827, %v835
      %v848 = vadd.f32 %v828, %v835
      %v849 = vadd.f32 %v829, %v835
      %v850 = vadd.f32 %v830, %v835
      %v851 = vadd.f32 %v831, %v835
      %v852 = vadd.f32 %v832, %v835
      %v853 = vmax.f32 %v837, 0.0
      %v854 = vmax.f32 %v838, 0.0
      %v855 = vmax.f32 %v839, 0.0
      %v856 = vmax.f32 %v840, 0.0
      %v857 = vmax.f32 %v841, 0.0
      %v858 = vmax.f32 %v842, 0.0
      %v859 = vmax.f32 %v843, 0.0
      %v860 = vmax.f32 %v844, 0.0
      %v861 = vmax.f32 %v845, 0.0
      %v862 = vmax.f32 %v846, 0.0
      %v863 = vmax.f32 %v847, 0.0
      %v864 = vmax.f32 %v848, 0.0
      %v865 = vmax.f32 %v849, 0.0
      %v866 = vmax.f32 %v850, 0.0
      %v867 = vmax.f32 %v851, 0.0
      %v868 = vmax.f32 %v852, 0.0
      %869 = vst [vmem:[%s254] sm:$0xff] %v853
      %870 = vst [vmem:[%s254 + $0x8] sm:$0xff] %v854
      %871 = vst [vmem:[%s254 + $0x10] sm:$0xff] %v855
      %872 = vst [vmem:[%s254 + $0x18] sm:$0xff] %v856
      %873 = vst [vmem:[%s254 + $0x20] sm:$0xff] %v857
      %874 = vst [vmem:[%s254 + $0x28] sm:$0xff] %v858
      %875 = vst [vmem:[%s254 + $0x30] sm:$0xff] %v859
      %876 = vst [vmem:[%s254 + $0x38] sm:$0xff] %v860
      %877 = vst [vmem:[%s254 + $0x40] sm:$0xff] %v861
      %878 = vst [vmem:[%s254 + $0x48] sm:$0xff] %v862
      %879 = vst [vmem:[%s254 + $0x50] sm:$0xff] %v863
      %880 = vst [vmem:[%s254 + $0x58] sm:$0xff] %v864
      %881 = vst [vmem:[%s254 + $0x60] sm:$0xff] %v865
      %882 = vst [vmem:[%s254 + $0x68] sm:$0xff] %v866
      %883 = vst [vmem:[%s254 + $0x70] sm:$0xff] %v867
      %884 = vst [vmem:[%s254 + $0x78] sm:$0xff] %v868
      %s885 = smul.u32 8, %s20
      %p886 = scmp.lt.s32.totalorder %s19, 1
      %s887 = scalar_select %p886, %s19, 1
      %p888 = scmp.lt.s32.totalorder %s885, 15
      %s889 = scalar_select %p888, %s885, 15
      %p890 = scmp.lt.s32.totalorder %s21, 0
      %s891 = scalar_select %p890, %s21, 0
      %s892 = smul.addr %s889, 2
      %s893 = sadd.s32 %s891, %s892
      %s894 = smul.addr %s887, 32
      %s895 = sadd.s32 %s893, %s894
      %s896 = smul.addr %s895, 8
      %s897 = scalar_lea.vmem %s3, %s896
      // Predicated region
      $region33: #{conv_forward.1} parent=31 // pred_check
        %p898 = pneg %p135
      $region34: #{conv_forward.1} parent=31 // pred_check_branch
        %900 = sbr.rel (%p898) target = $region36
      $region35: #{conv_forward.1} parent=31 // pred_region
        %s901 = smul.u32 8, %s20
      $region36: #{conv_forward.1} parent=31 // pred_fallthru
        _
    $region32: #{conv_forward.1} parent=5 // pred_fallthru
      _
    %p902 = scmp.le.s32.totalorder 2, %s9
    // Predicated region
    $region37: #{conv_forward.1} parent=5 // pred_check
      %p903 = pneg %p902
    $region38: #{conv_forward.1} parent=5 // pred_check_branch
      %905 = sbr.rel (%p903) target = $region40
    $region39: #{conv_forward.1} parent=5 // pred_region
      %s906 = ssub.s32 %s9, 2
      // Predicated region
      $region41: #{conv_forward.1} parent=39 // pred_check
        %p907 = pneg %p141
      $region42: #{conv_forward.1} parent=39 // pred_check_branch
        %909 = sbr.rel (%p907) target = $region44
      $region43: #{conv_forward.1} parent=39 // pred_region
        %s910 = smul.u32 8, %s23
        %p911 = scmp.lt.s32.totalorder %s22, 1
        %s912 = scalar_select %p911, %s22, 1
        %p913 = scmp.lt.s32.totalorder %s910, 15
        %s914 = scalar_select %p913, %s910, 15
        %p915 = scmp.lt.s32.totalorder %s24, 0
        %s916 = scalar_select %p915, %s24, 0
        %s917 = smul.addr %s914, 2
        %s918 = sadd.s32 %s916, %s917
        %s919 = smul.addr %s912, 32
        %s920 = sadd.s32 %s918, %s919
        %s921 = smul.addr %s920, 8
        %s922 = scalar_lea.vmem %s3, %s921
      $region44: #{conv_forward.1} parent=39 // pred_fallthru
        _
    $region40: #{conv_forward.1} parent=5 // pred_fallthru
      _
  $region6: #{conv_forward.1} parent=0 // loop_footer
    %s13 = sadd.s32 1, %s9
  $region7: #{conv_forward.1} parent=0 // loop_footer_branch
    %8 = sbr.rel target = $region3
  $region8: #{conv_forward.1} parent=0 // loop_exit
    _

</llo_original>
